<compile_context>
chip_gen: v6e
topology: v6e:2x2x1
jax: 0.10.0
libtpu: 0.0.40
codegen_flags: <defaults>
</compile_context>

<pallas_src>
import functools

import numpy as np
import jax
import jax.numpy as jnp
from jax import lax
from jax.experimental import pallas as pl
from jax.experimental.pallas import tpu as pltpu


# ----------------------------- Pallas kernel -----------------------------

def _attn_body(x_ref, qkv_w_ref, qkv_b_ref, bias_ref, proj_w_ref, proj_b_ref,
               mask_ref, o_ref, num_heads, scale):
    # x_ref:      (1, N, C)      one window of tokens
    # qkv_w_ref:  (C, 3C)        fused qkv projection (already (in, out) layout)
    # qkv_b_ref:  (1, 3C)
    # bias_ref:   (nh, N, N)     relative position bias
    # proj_w_ref: (C, C)
    # proj_b_ref: (1, C)
    # mask_ref:   (1, N, N) or None
    # o_ref:      (1, N, C)
    N, C = x_ref.shape[1], x_ref.shape[2]
    hd = C // num_heads

    # Fused qkv projection on the MXU (bf16 operands, f32 accumulation).
    x = x_ref[0].astype(jnp.bfloat16)                                   # (N, C)
    qkv = jnp.dot(x, qkv_w_ref[...].astype(jnp.bfloat16),
                  preferred_element_type=jnp.float32)                   # (N, 3C) f32
    qkv = qkv + qkv_b_ref[...].astype(jnp.float32)

    mask = None
    if mask_ref is not None:
        mask = mask_ref[0].astype(jnp.float32)                          # (N, N)

    heads = []
    for h in range(num_heads):                                          # static small loop
        q = qkv[:, h * hd:(h + 1) * hd].astype(jnp.bfloat16)            # (N, hd)
        k = qkv[:, C + h * hd:C + (h + 1) * hd].astype(jnp.bfloat16)    # (N, hd)
        v = qkv[:, 2 * C + h * hd:2 * C + (h + 1) * hd].astype(jnp.bfloat16)

        # scores = (q * scale) @ k^T  == scale * (q @ k^T); contract on hd (no transpose copy)
        s = lax.dot_general(q, k, (((1,), (1,)), ((), ())),
                            preferred_element_type=jnp.float32) * scale  # (N, N) f32
        s = s + bias_ref[h].astype(jnp.float32)
        if mask is not None:
            s = s + mask

        # numerically stable softmax, normalization via EUP reciprocal
        s = s - jnp.max(s, axis=-1, keepdims=True)
        p = jnp.exp(s)
        p = p * pl.reciprocal(jnp.sum(p, axis=-1, keepdims=True), approx=True)

        heads.append(jnp.dot(p.astype(jnp.bfloat16), v,
                             preferred_element_type=jnp.float32))        # (N, hd)

    # head merge (already in (N, nh*hd) = (N, C) layout) + output projection, fused
    o = jnp.concatenate(heads, axis=-1)                                  # (N, C) f32
    o = jnp.dot(o.astype(jnp.bfloat16), proj_w_ref[...].astype(jnp.bfloat16),
                preferred_element_type=jnp.float32)
    o = o + proj_b_ref[...].astype(jnp.float32)
    o_ref[0] = o.astype(o_ref.dtype)


def _window_attn_kernel(x_ref, qkv_w_ref, qkv_b_ref, bias_ref,
                        proj_w_ref, proj_b_ref, o_ref, *, num_heads, scale):
    _attn_body(x_ref, qkv_w_ref, qkv_b_ref, bias_ref, proj_w_ref, proj_b_ref,
               None, o_ref, num_heads, scale)


def _window_attn_kernel_masked(x_ref, qkv_w_ref, qkv_b_ref, bias_ref,
                               proj_w_ref, proj_b_ref, mask_ref, o_ref,
                               *, num_heads, scale):
    _attn_body(x_ref, qkv_w_ref, qkv_b_ref, bias_ref, proj_w_ref, proj_b_ref,
               mask_ref, o_ref, num_heads, scale)


# ----------------------------- wrapper -----------------------------

def window_attention_fwd(x, params, rel_index, *, num_heads, mask=None):
    """x: (B_, N, C) windows of tokens; mask: optional (nW, N, N)."""
    B_, N, C = x.shape
    nh = num_heads
    hd = C // nh
    scale = hd ** (-0.5)

    # relative position bias gather -> (nh, N, N); tiny, input-independent XLA glue
    rpb = jnp.take(params['rpb_table'], rel_index.reshape(-1), axis=0)
    rpb = rpb.reshape(N, N, nh).transpose(2, 0, 1)

    # All block last-two dims equal the full array dims -> no (8,128) tiling issues.
    in_specs = [
        pl.BlockSpec((1, N, C), lambda b: (b, 0, 0)),       # x, streamed per window
        pl.BlockSpec((C, 3 * C), lambda b: (0, 0)),         # qkv weight (VMEM-resident)
        pl.BlockSpec((1, 3 * C), lambda b: (0, 0)),
        pl.BlockSpec((nh, N, N), lambda b: (0, 0, 0)),      # relative position bias
        pl.BlockSpec((C, C), lambda b: (0, 0)),             # proj weight
        pl.BlockSpec((1, C), lambda b: (0, 0)),
    ]
    args = [x, params['qkv_w'], params['qkv_b'].reshape(1, 3 * C), rpb,
            params['proj_w'], params['proj_b'].reshape(1, C)]

    if mask is None:
        kernel = functools.partial(_window_attn_kernel, num_heads=nh, scale=scale)
    else:
        nW = mask.shape[0]
        in_specs.append(pl.BlockSpec((1, N, N), lambda b: (b % nW, 0, 0)))
        args.append(mask)
        kernel = functools.partial(_window_attn_kernel_masked, num_heads=nh, scale=scale)

    return pl.pallas_call(
        kernel,
        out_shape=jax.ShapeDtypeStruct((B_, N, C), x.dtype),
        grid=(B_,),
        in_specs=in_specs,
        out_specs=pl.BlockSpec((1, N, C), lambda b: (b, 0, 0)),
        compiler_params=pltpu.CompilerParams(
            dimension_semantics=("parallel",),
            vmem_limit_bytes=32 * 1024 * 1024),
    )(*args)


# ----------------------------- reference (pure JAX, f32) -----------------------------

def window_attention_ref(x, params, rel_index, *, num_heads, mask=None):
    B_, N, C = x.shape
    hd = C // num_heads
    scale = hd ** (-0.5)
    qkv = x @ params['qkv_w'] + params['qkv_b']
    qkv = qkv.reshape(B_, N, 3, num_heads, hd).transpose(2, 0, 3, 1, 4)
    q, k, v = qkv[0], qkv[1], qkv[2]
    attn = (q * scale) @ jnp.swapaxes(k, -2, -1)
    rpb = jnp.take(params['rpb_table'], rel_index.reshape(-1), axis=0)
    rpb = rpb.reshape(N, N, num_heads).transpose(2, 0, 1)
    attn = attn + rpb[None]
    if mask is not None:
        nW = mask.shape[0]
        attn = attn.reshape(B_ // nW, nW, num_heads, N, N) + mask[None, :, None]
        attn = attn.reshape(B_, num_heads, N, N)
    attn = jax.nn.softmax(attn, axis=-1)
    out = (attn @ v).transpose(0, 2, 1, 3).reshape(B_, N, C)
    return out @ params['proj_w'] + params['proj_b']


# ----------------------------- parameters / buffers -----------------------------

def make_relative_position_index(window_size):
    Wh, Ww = window_size
    coords = np.stack(np.meshgrid(np.arange(Wh), np.arange(Ww), indexing='ij'))
    coords_flatten = coords.reshape(2, -1)
    rel = coords_flatten[:, :, None] - coords_flatten[:, None, :]
    rel = rel.transpose(1, 2, 0).astype(np.int64)
    rel[:, :, 0] += Wh - 1
    rel[:, :, 1] += Ww - 1
    rel[:, :, 0] *= 2 * Ww - 1
    return jnp.asarray(rel.sum(-1), dtype=jnp.int32)        # (N, N)


def init_params(key, dim, window_size, num_heads):
    Wh, Ww = window_size
    keys = jax.random.split(key, 5)

    def rnd(k, shape, s=0.02):
        return jax.random.normal(k, shape, jnp.float32) * s

    return {
        # Linear weights stored as (in, out) so the kernel does x @ W directly.
        'qkv_w': rnd(keys[0], (dim, 3 * dim)),
        'qkv_b': rnd(keys[1], (3 * dim,)),
        'proj_w': rnd(keys[2], (dim, dim)),
        'proj_b': rnd(keys[3], (dim,)),
        'rpb_table': rnd(keys[4], ((2 * Wh - 1) * (2 * Ww - 1), num_heads)),
    }


# ----------------------------- main -----------------------------

if __name__ == "__main__":
    B_ = 4                       # batch * num_windows
    WINDOW = (8, 8)              # window_size -> N = 64 tokens per window
    N = WINDOW[0] * WINDOW[1]
    DIM = 32                     # channel dim
    NUM_HEADS = 2                # from the module's num_heads list [8, 5, 2]

    key = jax.random.PRNGKey(0)
    kx, kp, km = jax.random.split(key, 3)
    x = jax.random.normal(kx, (B_, N, DIM), jnp.float32)
    params = init_params(kp, DIM, WINDOW, NUM_HEADS)
    rel_index = make_relative_position_index(WINDOW)

    fwd = jax.jit(functools.partial(window_attention_fwd, num_heads=NUM_HEADS))

    # mask=None path (default forward)
    out = fwd(x, params, rel_index)
    jax.block_until_ready(out)
    assert out.shape == (B_, N, DIM), out.shape

    # masked path (shifted-window style additive mask of 0 / -100)
    nW = 2
    mask = jnp.where(jax.random.bernoulli(km, 0.5, (nW, N, N)),
                     0.0, -100.0).astype(jnp.float32)
    out_m = fwd(x, params, rel_index, mask=mask)
    jax.block_until_ready(out_m)
    assert out_m.shape == (B_, N, DIM), out_m.shape

    # loose check against the f32 reference (kernel feeds the MXU in bf16)
    ref = window_attention_ref(x, params, rel_index, num_heads=NUM_HEADS)
    ref_m = window_attention_ref(x, params, rel_index, num_heads=NUM_HEADS, mask=mask)
    err = float(jnp.max(jnp.abs(out - ref)))
    err_m = float(jnp.max(jnp.abs(out_m - ref_m)))
    assert err < 1e-2 and err_m < 1e-2, (err, err_m)

    print("KERNEL_OK")
</pallas_src>

<mosaic_0001>
module attributes {stable_mosaic.version = 11 : i64} {
  func.func @_window_attn_kernel(%arg0: i32, %arg1: memref<1x64x32xf32, #tpu.memory_space<vmem>>, %arg2: memref<32x96xf32, #tpu.memory_space<vmem>>, %arg3: memref<1x96xf32, #tpu.memory_space<vmem>>, %arg4: memref<2x64x64xf32, #tpu.memory_space<vmem>>, %arg5: memref<32x32xf32, #tpu.memory_space<vmem>>, %arg6: memref<1x32xf32, #tpu.memory_space<vmem>>, %arg7: memref<1x64x32xf32, #tpu.memory_space<vmem>>) attributes {dimension_semantics = [#tpu.dimension_semantics<parallel>], iteration_bounds = array<i64: 4>, scalar_prefetch = 0 : i64, scratch_operands = 0 : i64, tpu.core_type = #tpu.core_type<tc>, window_params = [{transform_indices = @transform_0, window_bounds = array<i64: 1, 64, 32>}, {pipeline_mode = #tpu.pipeline_mode<synchronous>, transform_indices = @transform_1, window_bounds = array<i64: 32, 96>}, {pipeline_mode = #tpu.pipeline_mode<synchronous>, transform_indices = @transform_2, window_bounds = array<i64: 1, 96>}, {pipeline_mode = #tpu.pipeline_mode<synchronous>, transform_indices = @transform_3, window_bounds = array<i64: 2, 64, 64>}, {pipeline_mode = #tpu.pipeline_mode<synchronous>, transform_indices = @transform_4, window_bounds = array<i64: 32, 32>}, {pipeline_mode = #tpu.pipeline_mode<synchronous>, transform_indices = @transform_5, window_bounds = array<i64: 1, 32>}, {transform_indices = @transform_6, window_bounds = array<i64: 1, 64, 32>}]} {
    %c0 = arith.constant 0 : index
    %c0_0 = arith.constant 0 : index
    %c0_1 = arith.constant 0 : index
    %0 = vector.load %arg1[%c0, %c0_0, %c0_1] : memref<1x64x32xf32, #tpu.memory_space<vmem>>, vector<1x64x32xf32>
    %1 = vector.shape_cast %0 : vector<1x64x32xf32> to vector<64x32xf32>
    %2 = arith.truncf %1 : vector<64x32xf32> to vector<64x32xbf16>
    %c0_2 = arith.constant 0 : index
    %c0_3 = arith.constant 0 : index
    %3 = vector.load %arg2[%c0_2, %c0_3] : memref<32x96xf32, #tpu.memory_space<vmem>>, vector<32x96xf32>
    %4 = arith.truncf %3 : vector<32x96xf32> to vector<32x96xbf16>
    %cst = arith.constant dense<0.000000e+00> : vector<64x96xf32>
    %5 = tpu.matmul %2, %4, %cst {dimension_numbers = #tpu.dot_dimension_numbers<[1], [0], [0], [1], [0, 0, 1, 1], [], []>} : vector<64x32xbf16>, vector<32x96xbf16>, vector<64x96xf32> -> vector<64x96xf32>
    %c0_4 = arith.constant 0 : index
    %c0_5 = arith.constant 0 : index
    %6 = vector.load %arg3[%c0_4, %c0_5] : memref<1x96xf32, #tpu.memory_space<vmem>>, vector<1x96xf32>
    %7 = vector.broadcast %6 : vector<1x96xf32> to vector<64x96xf32>
    %8 = arith.addf %5, %7 : vector<64x96xf32>
    %9 = vector.extract_strided_slice %8 {offsets = [0, 0], sizes = [64, 16], strides = [1, 1]} : vector<64x96xf32> to vector<64x16xf32>
    %10 = arith.truncf %9 : vector<64x16xf32> to vector<64x16xbf16>
    %11 = vector.extract_strided_slice %8 {offsets = [0, 32], sizes = [64, 16], strides = [1, 1]} : vector<64x96xf32> to vector<64x16xf32>
    %12 = arith.truncf %11 : vector<64x16xf32> to vector<64x16xbf16>
    %13 = vector.extract_strided_slice %8 {offsets = [0, 64], sizes = [64, 16], strides = [1, 1]} : vector<64x96xf32> to vector<64x16xf32>
    %14 = arith.truncf %13 : vector<64x16xf32> to vector<64x16xbf16>
    %cst_6 = arith.constant dense<0.000000e+00> : vector<64x64xf32>
    %15 = tpu.matmul %10, %12, %cst_6 {dimension_numbers = #tpu.dot_dimension_numbers<[1], [1], [0], [0], [0, 0, 1, 0], [], []>} : vector<64x16xbf16>, vector<64x16xbf16>, vector<64x64xf32> -> vector<64x64xf32>
    %cst_7 = arith.constant 2.500000e-01 : f32
    %16 = vector.broadcast %cst_7 : f32 to vector<64x64xf32>
    %17 = arith.mulf %15, %16 : vector<64x64xf32>
    %c0_8 = arith.constant 0 : index
    %c0_9 = arith.constant 0 : index
    %c0_10 = arith.constant 0 : index
    %18 = vector.load %arg4[%c0_8, %c0_9, %c0_10] : memref<2x64x64xf32, #tpu.memory_space<vmem>>, vector<1x64x64xf32>
    %19 = vector.shape_cast %18 : vector<1x64x64xf32> to vector<64x64xf32>
    %20 = arith.addf %17, %19 : vector<64x64xf32>
    %cst_11 = arith.constant dense<0xFF800000> : vector<64xf32>
    %21 = vector.multi_reduction <maximumf>, %20, %cst_11 [1] : vector<64x64xf32> to vector<64xf32>
    %22 = vector.shape_cast %21 : vector<64xf32> to vector<64x1xf32>
    %23 = vector.broadcast %22 : vector<64x1xf32> to vector<64x64xf32>
    %24 = arith.subf %20, %23 : vector<64x64xf32>
    %25 = math.exp %24 : vector<64x64xf32>
    %cst_12 = arith.constant dense<0.000000e+00> : vector<64xf32>
    %26 = vector.multi_reduction <add>, %25, %cst_12 [1] : vector<64x64xf32> to vector<64xf32>
    %27 = vector.shape_cast %26 : vector<64xf32> to vector<64x1xf32>
    %28 = tpu.reciprocal %27 {approx = true} : vector<64x1xf32> -> vector<64x1xf32>
    %29 = vector.broadcast %28 : vector<64x1xf32> to vector<64x64xf32>
    %30 = arith.mulf %25, %29 : vector<64x64xf32>
    %31 = arith.truncf %30 : vector<64x64xf32> to vector<64x64xbf16>
    %cst_13 = arith.constant dense<0.000000e+00> : vector<64x16xf32>
    %32 = tpu.matmul %31, %14, %cst_13 {dimension_numbers = #tpu.dot_dimension_numbers<[1], [0], [0], [1], [0, 0, 1, 1], [], []>} : vector<64x64xbf16>, vector<64x16xbf16>, vector<64x16xf32> -> vector<64x16xf32>
    %33 = vector.extract_strided_slice %8 {offsets = [0, 16], sizes = [64, 16], strides = [1, 1]} : vector<64x96xf32> to vector<64x16xf32>
    %34 = arith.truncf %33 : vector<64x16xf32> to vector<64x16xbf16>
    %35 = vector.extract_strided_slice %8 {offsets = [0, 48], sizes = [64, 16], strides = [1, 1]} : vector<64x96xf32> to vector<64x16xf32>
    %36 = arith.truncf %35 : vector<64x16xf32> to vector<64x16xbf16>
    %37 = vector.extract_strided_slice %8 {offsets = [0, 80], sizes = [64, 16], strides = [1, 1]} : vector<64x96xf32> to vector<64x16xf32>
    %38 = arith.truncf %37 : vector<64x16xf32> to vector<64x16xbf16>
    %cst_14 = arith.constant dense<0.000000e+00> : vector<64x64xf32>
    %39 = tpu.matmul %34, %36, %cst_14 {dimension_numbers = #tpu.dot_dimension_numbers<[1], [1], [0], [0], [0, 0, 1, 0], [], []>} : vector<64x16xbf16>, vector<64x16xbf16>, vector<64x64xf32> -> vector<64x64xf32>
    %cst_15 = arith.constant 2.500000e-01 : f32
    %40 = vector.broadcast %cst_15 : f32 to vector<64x64xf32>
    %41 = arith.mulf %39, %40 : vector<64x64xf32>
    %c1 = arith.constant 1 : index
    %c0_16 = arith.constant 0 : index
    %c0_17 = arith.constant 0 : index
    %42 = vector.load %arg4[%c1, %c0_16, %c0_17] : memref<2x64x64xf32, #tpu.memory_space<vmem>>, vector<1x64x64xf32>
    %43 = vector.shape_cast %42 : vector<1x64x64xf32> to vector<64x64xf32>
    %44 = arith.addf %41, %43 : vector<64x64xf32>
    %cst_18 = arith.constant dense<0xFF800000> : vector<64xf32>
    %45 = vector.multi_reduction <maximumf>, %44, %cst_18 [1] : vector<64x64xf32> to vector<64xf32>
    %46 = vector.shape_cast %45 : vector<64xf32> to vector<64x1xf32>
    %47 = vector.broadcast %46 : vector<64x1xf32> to vector<64x64xf32>
    %48 = arith.subf %44, %47 : vector<64x64xf32>
    %49 = math.exp %48 : vector<64x64xf32>
    %cst_19 = arith.constant dense<0.000000e+00> : vector<64xf32>
    %50 = vector.multi_reduction <add>, %49, %cst_19 [1] : vector<64x64xf32> to vector<64xf32>
    %51 = vector.shape_cast %50 : vector<64xf32> to vector<64x1xf32>
    %52 = tpu.reciprocal %51 {approx = true} : vector<64x1xf32> -> vector<64x1xf32>
    %53 = vector.broadcast %52 : vector<64x1xf32> to vector<64x64xf32>
    %54 = arith.mulf %49, %53 : vector<64x64xf32>
    %55 = arith.truncf %54 : vector<64x64xf32> to vector<64x64xbf16>
    %cst_20 = arith.constant dense<0.000000e+00> : vector<64x16xf32>
    %56 = tpu.matmul %55, %38, %cst_20 {dimension_numbers = #tpu.dot_dimension_numbers<[1], [0], [0], [1], [0, 0, 1, 1], [], []>} : vector<64x64xbf16>, vector<64x16xbf16>, vector<64x16xf32> -> vector<64x16xf32>
    %57 = tpu.concatenate %32, %56 in 1 : vector<64x16xf32>, vector<64x16xf32> -> vector<64x32xf32>
    %58 = arith.truncf %57 : vector<64x32xf32> to vector<64x32xbf16>
    %c0_21 = arith.constant 0 : index
    %c0_22 = arith.constant 0 : index
    %59 = vector.load %arg5[%c0_21, %c0_22] : memref<32x32xf32, #tpu.memory_space<vmem>>, vector<32x32xf32>
    %60 = arith.truncf %59 : vector<32x32xf32> to vector<32x32xbf16>
    %cst_23 = arith.constant dense<0.000000e+00> : vector<64x32xf32>
    %61 = tpu.matmul %58, %60, %cst_23 {dimension_numbers = #tpu.dot_dimension_numbers<[1], [0], [0], [1], [0, 0, 1, 1], [], []>} : vector<64x32xbf16>, vector<32x32xbf16>, vector<64x32xf32> -> vector<64x32xf32>
    %c0_24 = arith.constant 0 : index
    %c0_25 = arith.constant 0 : index
    %62 = vector.load %arg6[%c0_24, %c0_25] : memref<1x32xf32, #tpu.memory_space<vmem>>, vector<1x32xf32>
    %63 = vector.broadcast %62 : vector<1x32xf32> to vector<64x32xf32>
    %64 = arith.addf %61, %63 : vector<64x32xf32>
    %c0_26 = arith.constant 0 : index
    %c0_27 = arith.constant 0 : index
    %c0_28 = arith.constant 0 : index
    %65 = vector.load %arg7[%c0_26, %c0_27, %c0_28] : memref<1x64x32xf32, #tpu.memory_space<vmem>>, vector<1x64x32xf32>
    %66 = vector.shape_cast %65 : vector<1x64x32xf32> to vector<64x32xf32>
    %67 = vector.shape_cast %64 : vector<64x32xf32> to vector<1x64x32xf32>
    tpu.vector_store %arg7[%c0_26, %c0_27, %c0_28], %67 {strides = array<i32>} : memref<1x64x32xf32, #tpu.memory_space<vmem>>, vector<1x64x32xf32>,
    return
  }
  func.func @transform_0(%arg0: i32) -> (i32, i32, i32) {
    %c0_i32 = arith.constant 0 : i32
    %c0_i32_0 = arith.constant 0 : i32
    %c0_i32_1 = arith.constant 0 : i32
    return %arg0, %c0_i32, %c0_i32_0 : i32, i32, i32
  }
  func.func @transform_1(%arg0: i32) -> (i32, i32) {
    %c0_i32 = arith.constant 0 : i32
    %c0_i32_0 = arith.constant 0 : i32
    %c0_i32_1 = arith.constant 0 : i32
    return %c0_i32, %c0_i32_0 : i32, i32
  }
  func.func @transform_2(%arg0: i32) -> (i32, i32) {
    %c0_i32 = arith.constant 0 : i32
    %c0_i32_0 = arith.constant 0 : i32
    %c0_i32_1 = arith.constant 0 : i32
    return %c0_i32, %c0_i32_0 : i32, i32
  }
  func.func @transform_3(%arg0: i32) -> (i32, i32, i32) {
    %c0_i32 = arith.constant 0 : i32
    %c0_i32_0 = arith.constant 0 : i32
    %c0_i32_1 = arith.constant 0 : i32
    %c0_i32_2 = arith.constant 0 : i32
    return %c0_i32, %c0_i32_0, %c0_i32_1 : i32, i32, i32
  }
  func.func @transform_4(%arg0: i32) -> (i32, i32) {
    %c0_i32 = arith.constant 0 : i32
    %c0_i32_0 = arith.constant 0 : i32
    %c0_i32_1 = arith.constant 0 : i32
    return %c0_i32, %c0_i32_0 : i32, i32
  }
  func.func @transform_5(%arg0: i32) -> (i32, i32) {
    %c0_i32 = arith.constant 0 : i32
    %c0_i32_0 = arith.constant 0 : i32
    %c0_i32_1 = arith.constant 0 : i32
    return %c0_i32, %c0_i32_0 : i32, i32
  }
  func.func @transform_6(%arg0: i32) -> (i32, i32, i32) {
    %c0_i32 = arith.constant 0 : i32
    %c0_i32_0 = arith.constant 0 : i32
    %c0_i32_1 = arith.constant 0 : i32
    return %arg0, %c0_i32, %c0_i32_0 : i32, i32, i32
  }
}

</mosaic_0001>

<llo_original>
// kernel: window_attention_fwd.1
$region0: #{window_attention_fwd.1}
  #allocation0 [shape = 'u32[]', space=smem, size = 0x4, offset = 0x4, fixed_abs, tag = 'smem constant byte address 0x4 - core index']
  #allocation1 [shape = 'u32[144,128]{1,0:T(1,128)}', space=vmem, size = 0x12000, scoped, tag = 'internal scratch']
  %s0 = inlined_call_operand.vmem [shape: f32[4,64,32], index: 0, kind: input, shape index: {}]
  %s1 = inlined_call_operand.vmem [shape: f32[32,96], index: 1, kind: input, shape index: {}]
  %s2 = inlined_call_operand.vmem [shape: f32[1,96], index: 2, kind: input, shape index: {}]
  %s3 = inlined_call_operand.vmem [shape: f32[2,64,64], index: 3, kind: input, shape index: {}]
  %s4 = inlined_call_operand.vmem [shape: f32[32,32], index: 4, kind: input, shape index: {}]
  %s5 = inlined_call_operand.vmem [shape: f32[1,32], index: 5, kind: input, shape index: {}]
  %s6 = inlined_call_operand.vmem [shape: f32[4,64,32], index: 6, kind: output, shape index: {}]
  %s7 = sld [smem:[#allocation0]]
  $region57: #{window_attention_fwd.1} parent=0
    _
  %s9 = ssub.s32 1, %s7
  %s10 = scalar_select 0, %s9, %s7
  loop: start=0, step=1, limit=6
  $region2: #{window_attention_fwd.1} parent=0 // loop_pre_header
    _
  $region3: #{window_attention_fwd.1} parent=0 // loop_header
    %s12 = sphi 0, %s16
    %p13 = scmp.ge.s32.totalorder %s12, 6
    %s22 = sphi 0, %s24
    %s25 = sphi 0, %s22
    %s26 = sphi 0, %s25
    %s42 = sphi 0, %s26
    %s46 = sphi 0, %s46
    %s48 = sphi 0, %s46
    %s49 = sphi 0, %s48
    %s63 = sphi 0, %s49
    %s67 = sphi 0, %s67
    %s69 = sphi 0, %s67
    %s70 = sphi 0, %s69
    %s84 = sphi 0, %s70
    %s88 = sphi 0, %s88
    %s90 = sphi 0, %s88
    %s91 = sphi 0, %s90
    %s105 = sphi 0, %s91
    %s109 = sphi 0, %s109
    %s111 = sphi 0, %s109
    %s112 = sphi 0, %s111
    %s126 = sphi 0, %s112
    %s130 = sphi 0, %s130
    %s132 = sphi 0, %s130
    %s133 = sphi 0, %s132
    %s147 = sphi 0, %s133
    %s153 = sphi 0, %s155
    %s156 = sphi 0, %s153
    %s157 = sphi 0, %s156
    %s173 = sphi 0, %s157
  $region4: #{window_attention_fwd.1} parent=0 // loop_header_branch
    %15 = sbr.rel (%p13) target = $region8
  $region5: #{window_attention_fwd.1} parent=0 // loop_body
    %s17 = ssub.s32 %s12, 1
    %s18 = ssub.s32 %s12, 2
    %s19 = sadd.s32 %s12, 1
    %s20 = ssub.s32 %s12, %s19
    %p21 = scmp.eq.s32.totalorder %s20, 0
    %s23 = sadd.s32 %s22, 1
    %s24 = scalar_select %p21, %s22, %s23
    %p27 = pneg %p21
    %p28 = scmp.eq.s32.totalorder %s12, 3
    %p29 = por %p27, %p28
    %p30 = scmp.ne.s32.totalorder %s22, %s25
    %p31 = scmp.eq.s32.totalorder %s12, 0
    %p32 = por %p30, %p31
    %p33 = scmp.ne.s32.totalorder %s22, %s25
    %p34 = scmp.eq.s32.totalorder %s17, 3
    %p35 = por %p33, %p34
    %p36 = scmp.ne.s32.totalorder %s25, %s26
    %p37 = scmp.eq.s32.totalorder %s17, 0
    %p38 = por %p36, %p37
    %p39 = scmp.ne.s32.totalorder %s25, %s26
    %p40 = scmp.eq.s32.totalorder %s18, 3
    %p41 = por %p39, %p40
    %p43 = scmp.ne.s32.totalorder %s26, %s42
    %p44 = scmp.eq.s32.totalorder %s18, 0
    %p45 = por %p43, %p44
    %s47 = sadd.s32 %s46, 1
    %p50 = scmp.eq.s32.totalorder %s12, 3
    %p51 = scmp.ne.s32.totalorder %s46, %s48
    %p52 = scmp.eq.s32.totalorder %s12, 0
    %p53 = por %p51, %p52
    %p54 = scmp.ne.s32.totalorder %s46, %s48
    %p55 = scmp.eq.s32.totalorder %s17, 3
    %p56 = por %p54, %p55
    %p57 = scmp.ne.s32.totalorder %s48, %s49
    %p58 = scmp.eq.s32.totalorder %s17, 0
    %p59 = por %p57, %p58
    %p60 = scmp.ne.s32.totalorder %s48, %s49
    %p61 = scmp.eq.s32.totalorder %s18, 3
    %p62 = por %p60, %p61
    %p64 = scmp.ne.s32.totalorder %s49, %s63
    %p65 = scmp.eq.s32.totalorder %s18, 0
    %p66 = por %p64, %p65
    %s68 = sadd.s32 %s67, 1
    %p71 = scmp.eq.s32.totalorder %s12, 3
    %p72 = scmp.ne.s32.totalorder %s67, %s69
    %p73 = scmp.eq.s32.totalorder %s12, 0
    %p74 = por %p72, %p73
    %p75 = scmp.ne.s32.totalorder %s67, %s69
    %p76 = scmp.eq.s32.totalorder %s17, 3
    %p77 = por %p75, %p76
    %p78 = scmp.ne.s32.totalorder %s69, %s70
    %p79 = scmp.eq.s32.totalorder %s17, 0
    %p80 = por %p78, %p79
    %p81 = scmp.ne.s32.totalorder %s69, %s70
    %p82 = scmp.eq.s32.totalorder %s18, 3
    %p83 = por %p81, %p82
    %p85 = scmp.ne.s32.totalorder %s70, %s84
    %p86 = scmp.eq.s32.totalorder %s18, 0
    %p87 = por %p85, %p86
    %s89 = sadd.s32 %s88, 1
    %p92 = scmp.eq.s32.totalorder %s12, 3
    %p93 = scmp.ne.s32.totalorder %s88, %s90
    %p94 = scmp.eq.s32.totalorder %s12, 0
    %p95 = por %p93, %p94
    %p96 = scmp.ne.s32.totalorder %s88, %s90
    %p97 = scmp.eq.s32.totalorder %s17, 3
    %p98 = por %p96, %p97
    %p99 = scmp.ne.s32.totalorder %s90, %s91
    %p100 = scmp.eq.s32.totalorder %s17, 0
    %p101 = por %p99, %p100
    %p102 = scmp.ne.s32.totalorder %s90, %s91
    %p103 = scmp.eq.s32.totalorder %s18, 3
    %p104 = por %p102, %p103
    %p106 = scmp.ne.s32.totalorder %s91, %s105
    %p107 = scmp.eq.s32.totalorder %s18, 0
    %p108 = por %p106, %p107
    %s110 = sadd.s32 %s109, 1
    %p113 = scmp.eq.s32.totalorder %s12, 3
    %p114 = scmp.ne.s32.totalorder %s109, %s111
    %p115 = scmp.eq.s32.totalorder %s12, 0
    %p116 = por %p114, %p115
    %p117 = scmp.ne.s32.totalorder %s109, %s111
    %p118 = scmp.eq.s32.totalorder %s17, 3
    %p119 = por %p117, %p118
    %p120 = scmp.ne.s32.totalorder %s111, %s112
    %p121 = scmp.eq.s32.totalorder %s17, 0
    %p122 = por %p120, %p121
    %p123 = scmp.ne.s32.totalorder %s111, %s112
    %p124 = scmp.eq.s32.totalorder %s18, 3
    %p125 = por %p123, %p124
    %p127 = scmp.ne.s32.totalorder %s112, %s126
    %p128 = scmp.eq.s32.totalorder %s18, 0
    %p129 = por %p127, %p128
    %s131 = sadd.s32 %s130, 1
    %p134 = scmp.eq.s32.totalorder %s12, 3
    %p135 = scmp.ne.s32.totalorder %s130, %s132
    %p136 = scmp.eq.s32.totalorder %s12, 0
    %p137 = por %p135, %p136
    %p138 = scmp.ne.s32.totalorder %s130, %s132
    %p139 = scmp.eq.s32.totalorder %s17, 3
    %p140 = por %p138, %p139
    %p141 = scmp.ne.s32.totalorder %s132, %s133
    %p142 = scmp.eq.s32.totalorder %s17, 0
    %p143 = por %p141, %p142
    %p144 = scmp.ne.s32.totalorder %s132, %s133
    %p145 = scmp.eq.s32.totalorder %s18, 3
    %p146 = por %p144, %p145
    %p148 = scmp.ne.s32.totalorder %s133, %s147
    %p149 = scmp.eq.s32.totalorder %s18, 0
    %p150 = por %p148, %p149
    %s151 = ssub.s32 %s12, %s19
    %p152 = scmp.eq.s32.totalorder %s151, 0
    %s154 = sadd.s32 %s153, 1
    %s155 = scalar_select %p152, %s153, %s154
    %p158 = pneg %p152
    %p159 = scmp.eq.s32.totalorder %s12, 3
    %p160 = por %p158, %p159
    %p161 = scmp.ne.s32.totalorder %s153, %s156
    %p162 = scmp.eq.s32.totalorder %s12, 0
    %p163 = por %p161, %p162
    %p164 = scmp.ne.s32.totalorder %s153, %s156
    %p165 = scmp.eq.s32.totalorder %s17, 3
    %p166 = por %p164, %p165
    %p167 = scmp.ne.s32.totalorder %s156, %s157
    %p168 = scmp.eq.s32.totalorder %s17, 0
    %p169 = por %p167, %p168
    %p170 = scmp.ne.s32.totalorder %s156, %s157
    %p171 = scmp.eq.s32.totalorder %s18, 3
    %p172 = por %p170, %p171
    %p174 = scmp.ne.s32.totalorder %s157, %s173
    %p175 = scmp.eq.s32.totalorder %s18, 0
    %p176 = por %p174, %p175
    %p177 = scmp.le.s32.totalorder 1, %s12
    %p178 = scmp.lt.s32.totalorder %s12, 5
    %p179 = pnand %p177, %p178
    %p180 = pneg %p179
    // Predicated region
    $region9: #{window_attention_fwd.1} parent=5 // pred_check
      _
    $region10: #{window_attention_fwd.1} parent=5 // pred_check_branch
      %182 = sbr.rel (%p179) target = $region12
    $region11: #{window_attention_fwd.1} parent=5 // pred_region
      %s183 = ssub.s32 %s12, 1
      // Predicated region
      $region13: #{window_attention_fwd.1} parent=11 // pred_check
        %p184 = pneg %p59
      $region14: #{window_attention_fwd.1} parent=11 // pred_check_branch
        %186 = sbr.rel (%p184) target = $region16
      $region15: #{window_attention_fwd.1} parent=11 // pred_region
        _
      $region16: #{window_attention_fwd.1} parent=11 // pred_fallthru
        _
      // Predicated region
      $region17: #{window_attention_fwd.1} parent=11 // pred_check
        %p187 = pneg %p80
      $region18: #{window_attention_fwd.1} parent=11 // pred_check_branch
        %189 = sbr.rel (%p187) target = $region20
      $region19: #{window_attention_fwd.1} parent=11 // pred_region
        _
      $region20: #{window_attention_fwd.1} parent=11 // pred_fallthru
        _
      // Predicated region
      $region21: #{window_attention_fwd.1} parent=11 // pred_check
        %p190 = pneg %p101
      $region22: #{window_attention_fwd.1} parent=11 // pred_check_branch
        %192 = sbr.rel (%p190) target = $region24
      $region23: #{window_attention_fwd.1} parent=11 // pred_region
        _
      $region24: #{window_attention_fwd.1} parent=11 // pred_fallthru
        _
      // Predicated region
      $region25: #{window_attention_fwd.1} parent=11 // pred_check
        %p193 = pneg %p122
      $region26: #{window_attention_fwd.1} parent=11 // pred_check_branch
        %195 = sbr.rel (%p193) target = $region28
      $region27: #{window_attention_fwd.1} parent=11 // pred_region
        _
      $region28: #{window_attention_fwd.1} parent=11 // pred_fallthru
        _
      // Predicated region
      $region29: #{window_attention_fwd.1} parent=11 // pred_check
        %p196 = pneg %p143
      $region30: #{window_attention_fwd.1} parent=11 // pred_check_branch
        %198 = sbr.rel (%p196) target = $region32
      $region31: #{window_attention_fwd.1} parent=11 // pred_region
        _
      $region32: #{window_attention_fwd.1} parent=11 // pred_fallthru
        _
    $region12: #{window_attention_fwd.1} parent=5 // pred_fallthru
      _
    %p199 = scmp.lt.s32.totalorder %s12, 4
    // Predicated region
    $region33: #{window_attention_fwd.1} parent=5 // pred_check
      %p200 = pneg %p199
    $region34: #{window_attention_fwd.1} parent=5 // pred_check_branch
      %202 = sbr.rel (%p200) target = $region36
    $region35: #{window_attention_fwd.1} parent=5 // pred_region
      // Predicated region
      $region37: #{window_attention_fwd.1} parent=35 // pred_check
        %p203 = pneg %p32
      $region38: #{window_attention_fwd.1} parent=35 // pred_check_branch
        %205 = sbr.rel (%p203) target = $region40
      $region39: #{window_attention_fwd.1} parent=35 // pred_region
        %p206 = scmp.lt.s32.totalorder %s12, 3
        %s207 = scalar_select %p206, %s12, 3
        %s208 = smul.addr %s207, 8
        %s209 = smul.addr %s208, 8
        %s210 = scalar_lea.vmem %s0, %s209
      $region40: #{window_attention_fwd.1} parent=35 // pred_fallthru
        _
    $region36: #{window_attention_fwd.1} parent=5 // pred_fallthru
      _
    %p211 = scmp.le.s32.totalorder 1, %s12
    %p212 = scmp.lt.s32.totalorder %s12, 5
    %p213 = pnand %p211, %p212
    %p214 = pneg %p213
    // Predicated region
    $region41: #{window_attention_fwd.1} parent=5 // pred_check
      _
    $region42: #{window_attention_fwd.1} parent=5 // pred_check_branch
      %216 = sbr.rel (%p213) target = $region44
    $region43: #{window_attention_fwd.1} parent=5 // pred_region
      %s217 = ssub.s32 %s12, 1
      %p218 = scmp.lt.s32.totalorder %s17, 3
      %s219 = scalar_select %p218, %s17, 3
      %s220 = smul.addr %s219, 8
      %s221 = smul.addr %s220, 8
      %s222 = scalar_lea.vmem %s0, %s221
      %p223 = pneg %p38
      %p224 = pneg %p35
      %p225 = pneg %p59
      %p226 = pneg %p56
      %p227 = pneg %p80
      %p228 = pneg %p77
      %p229 = pneg %p101
      %p230 = pneg %p98
      %p231 = pneg %p122
      %p232 = pneg %p119
      %p233 = pneg %p143
      %p234 = pneg %p140
      %p235 = pneg %p169
      %p236 = pneg %p166
      %p237 = scmp.lt.s32.totalorder %s17, 3
      %s238 = scalar_select %p237, %s17, 3
      %s239 = smul.addr %s238, 8
      %s240 = smul.addr %s239, 8
      %s241 = scalar_lea.vmem %s6, %s240
      %p242 = scmp.lt.s32.totalorder %s17, 3
      %s243 = scalar_select %p242, %s17, 3
      %s244 = smul.addr %s243, 8
      %s245 = smul.addr %s244, 8
      %s246 = scalar_lea.vmem %s0, %s245
      %p247 = scmp.lt.s32.totalorder %s17, 3
      %s248 = scalar_select %p247, %s17, 3
      %s249 = smul.addr %s248, 8
      %s250 = smul.addr %s249, 8
      %s251 = scalar_lea.vmem %s6, %s250
      %v253 = vld [vmem:[%s246] sm:$0xff]
      %v254 = vld [vmem:[%s246 + $0x8] sm:$0xff]
      %v255 = vld [vmem:[%s246 + $0x10] sm:$0xff]
      %v256 = vld [vmem:[%s246 + $0x18] sm:$0xff]
      %v257 = vld [vmem:[%s246 + $0x20] sm:$0xff]
      %v258 = vld [vmem:[%s246 + $0x28] sm:$0xff]
      %v259 = vld [vmem:[%s246 + $0x30] sm:$0xff]
      %v260 = vld [vmem:[%s246 + $0x38] sm:$0xff]
      %v261 = vpack.c.bf16 %v254, %v253
      %v262 = vpack.c.bf16 %v256, %v255
      %v263 = vpack.c.bf16 %v258, %v257
      %v264 = vpack.c.bf16 %v260, %v259
      %v265 = vld [vmem:[%s1] sm:$0xff]
      %v266 = vld [vmem:[%s1 + $0x8] sm:$0xff]
      %v267 = vld [vmem:[%s1 + $0x10] sm:$0xff]
      %v268 = vld [vmem:[%s1 + $0x18] sm:$0xff]
      %v269 = vpack.c.bf16 %v266, %v265
      %v270 = vpack.c.bf16 %v268, %v267
      %v271 = vld [vmem:[%s2] sm:$0x1]
      %v273 = vlaneseq
      %v274 = vshrl.u32 %v273, 7
      %v275 = vsub.s32 0, %v274
      %v276 = vrot.slane %v271, %v275
      %vm278 = vcmask 261120
      %v280 = vsel %vm278, %v261, 0
      %v283 = vsel %vm278, %v262, 0
      %v286 = vsel %vm278, %v263, 0
      %v289 = vsel %vm278, %v264, 0
      %291 = vmatprep.subr.bf16.mxu0 0
      %292 = vmatpush1.bf16.msra.mxu0 0
      %293 = vmatprep.subr.bf16.mxu0 0
      %294 = vmatpush1.bf16.msra.mxu0 0
      %295 = vmatprep.subr.bf16.mxu0 0
      %296 = vmatpush1.bf16.msra.mxu0 0
      %297 = vmatprep.subr.bf16.mxu0 0
      %298 = vmatpush1.bf16.msra.mxu0 0
      %299 = vmatprep.subr.bf16.mxu0 0
      %300 = vmatpush1.bf16.msra.mxu0 0
      %301 = vmatprep.subr.bf16.mxu0 0
      %302 = vmatpush1.bf16.msra.mxu0 0
      %303 = vmatprep.subr.bf16.mxu0 0
      %304 = vmatpush1.bf16.msra.mxu0 %v270
      %305 = vmatprep.subr.bf16.mxu0 0
      %306 = vmatpush1.bf16.msra.mxu0 %v269
      %307 = vmatprep.subr.bf16.mxu0 0
      %308 = vmatpush2.bf16.msra.mxu0 0
      %309 = vmatprep.subr.bf16.mxu0 0
      %310 = vmatpush2.bf16.msra.mxu0 0
      %311 = vmatprep.subr.bf16.mxu0 0
      %312 = vmatpush2.bf16.msra.mxu0 0
      %313 = vmatprep.subr.bf16.mxu0 0
      %314 = vmatpush2.bf16.msra.mxu0 0
      %315 = vmatprep.subr.bf16.mxu0 0
      %316 = vmatpush2.bf16.msra.mxu0 0
      %317 = vmatprep.subr.bf16.mxu0 0
      %318 = vmatpush2.bf16.msra.mxu0 0
      %319 = vmatprep.subr.bf16.mxu0 0
      %320 = vmatpush2.bf16.msra.mxu0 0
      %321 = vmatprep.subr.bf16.mxu0 0
      %322 = vmatpush2.bf16.msra.mxu0 0
      %323 = vmatprep.mubr.bf16.mxu0 0
      %324 = vmatmul.mubr.bf16.gmra.mxu0 %v280
      %v325 = vpop.f32.mrf.mxu0
      %v326 = vadd.f32 %v276, %v325
      %v327 = vpop.f32.mrf.mxu0
      %v328 = vpop.f32.mrf.mxu0
      %v329 = vadd.f32 %v276, %v328
      %v330 = vpop.f32.mrf.mxu0
      %331 = vmatprep.mubr.bf16.mxu0 0
      %332 = vmatmul.mubr.bf16.gmra.mxu0 %v283
      %v333 = vpop.f32.mrf.mxu0
      %v334 = vadd.f32 %v276, %v333
      %v335 = vpop.f32.mrf.mxu0
      %v336 = vpop.f32.mrf.mxu0
      %v337 = vadd.f32 %v276, %v336
      %v338 = vpop.f32.mrf.mxu0
      %339 = vmatprep.mubr.bf16.mxu0 0
      %340 = vmatmul.mubr.bf16.gmra.mxu0 %v286
      %v341 = vpop.f32.mrf.mxu0
      %v342 = vadd.f32 %v276, %v341
      %v343 = vpop.f32.mrf.mxu0
      %v344 = vpop.f32.mrf.mxu0
      %v345 = vadd.f32 %v276, %v344
      %v346 = vpop.f32.mrf.mxu0
      %347 = vmatprep.mubr.bf16.mxu0 0
      %348 = vmatmul.mubr.bf16.gmra.mxu0 %v289
      %v349 = vpop.f32.mrf.mxu0
      %v350 = vadd.f32 %v276, %v349
      %v351 = vpop.f32.mrf.mxu0
      %v352 = vpop.f32.mrf.mxu0
      %v353 = vadd.f32 %v276, %v352
      %v354 = vpop.f32.mrf.mxu0
      %355 = vdwg.mxu0
      %v356 = vpack.c.bf16 %v329, %v326
      %v357 = vpack.c.bf16 %v337, %v334
      %v358 = vpack.c.bf16 %v345, %v342
      %v359 = vpack.c.bf16 %v353, %v350
      %364 = vrot.lane.b32.xlu0 %v356, 96
      %v365 = vpop.permute.xlu0 %364
      %366 = vrot.lane.b32.xlu0 %v357, 96
      %v367 = vpop.permute.xlu0 %366
      %368 = vrot.lane.b32.xlu0 %v358, 96
      %v369 = vpop.permute.xlu0 %368
      %370 = vrot.lane.b32.xlu0 %v359, 96
      %v371 = vpop.permute.xlu0 %370
      %vm372 = vcmask 130048
      %v374 = vsel %vm372, %v356, 0
      %v377 = vsel %vm372, %v357, 0
      %v380 = vsel %vm372, %v358, 0
      %v383 = vsel %vm372, %v359, 0
      %v386 = vsel %vm372, %v365, 0
      %v389 = vsel %vm372, %v367, 0
      %v392 = vsel %vm372, %v369, 0
      %v395 = vsel %vm372, %v371, 0
      %397 = vmatprep.subr.bf16.mxu0 0
      %398 = vmatpush1.bf16.xpose.msra.mxu0 0
      %399 = vmatprep.subr.bf16.mxu0 0
      %400 = vmatpush1.bf16.xpose.msra.mxu0 0
      %401 = vmatprep.subr.bf16.mxu0 0
      %402 = vmatpush1.bf16.xpose.msra.mxu0 0
      %403 = vmatprep.subr.bf16.mxu0 0
      %404 = vmatpush1.bf16.xpose.msra.mxu0 0
      %405 = vmatprep.subr.bf16.mxu0 0
      %406 = vmatpush1.bf16.xpose.msra.mxu0 %v395
      %407 = vmatprep.subr.bf16.mxu0 0
      %408 = vmatpush1.bf16.xpose.msra.mxu0 %v392
      %409 = vmatprep.subr.bf16.mxu0 0
      %410 = vmatpush1.bf16.xpose.msra.mxu0 %v389
      %411 = vmatprep.subr.bf16.mxu0 0
      %412 = vmatpush1.bf16.xpose.msra.mxu0 %v386
      %413 = vmatprep.subr.bf16.mxu0 0
      %414 = vmatpush2.bf16.xpose.msra.mxu0 0
      %415 = vmatprep.subr.bf16.mxu0 0
      %416 = vmatpush2.bf16.xpose.msra.mxu0 0
      %417 = vmatprep.subr.bf16.mxu0 0
      %418 = vmatpush2.bf16.xpose.msra.mxu0 0
      %419 = vmatprep.subr.bf16.mxu0 0
      %420 = vmatpush2.bf16.xpose.msra.mxu0 0
      %421 = vmatprep.subr.bf16.mxu0 0
      %422 = vmatpush2.bf16.xpose.msra.mxu0 0
      %423 = vmatprep.subr.bf16.mxu0 0
      %424 = vmatpush2.bf16.xpose.msra.mxu0 0
      %425 = vmatprep.subr.bf16.mxu0 0
      %426 = vmatpush2.bf16.xpose.msra.mxu0 0
      %427 = vmatprep.subr.bf16.mxu0 0
      %428 = vmatpush2.bf16.xpose.msra.mxu0 0
      %429 = vmatprep.mubr.bf16.mxu0 0
      %430 = vmatmul.mubr.bf16.gmra.mxu0 %v374
      %v431 = vpop.f32.mrf.mxu0
      %v432 = vadd.f32 0.0, %v431
      %v433 = vpop.f32.mrf.mxu0
      %v434 = vpop.f32.mrf.mxu0
      %v435 = vadd.f32 0.0, %v434
      %v436 = vpop.f32.mrf.mxu0
      %437 = vmatprep.mubr.bf16.mxu0 0
      %438 = vmatmul.mubr.bf16.gmra.mxu0 %v377
      %v439 = vpop.f32.mrf.mxu0
      %v440 = vadd.f32 0.0, %v439
      %v441 = vpop.f32.mrf.mxu0
      %v442 = vpop.f32.mrf.mxu0
      %v443 = vadd.f32 0.0, %v442
      %v444 = vpop.f32.mrf.mxu0
      %445 = vmatprep.mubr.bf16.mxu0 0
      %446 = vmatmul.mubr.bf16.gmra.mxu0 %v380
      %v447 = vpop.f32.mrf.mxu0
      %v448 = vadd.f32 0.0, %v447
      %v449 = vpop.f32.mrf.mxu0
      %v450 = vpop.f32.mrf.mxu0
      %v451 = vadd.f32 0.0, %v450
      %v452 = vpop.f32.mrf.mxu0
      %453 = vmatprep.mubr.bf16.mxu0 0
      %454 = vmatmul.mubr.bf16.gmra.mxu0 %v383
      %v455 = vpop.f32.mrf.mxu0
      %v456 = vadd.f32 0.0, %v455
      %v457 = vpop.f32.mrf.mxu0
      %v458 = vpop.f32.mrf.mxu0
      %v459 = vadd.f32 0.0, %v458
      %v460 = vpop.f32.mrf.mxu0
      %461 = vdwg.mxu0
      %v462 = vmul.f32 %v432, 0.25
      %v463 = vmul.f32 %v435, 0.25
      %v464 = vmul.f32 %v440, 0.25
      %v465 = vmul.f32 %v443, 0.25
      %v466 = vmul.f32 %v448, 0.25
      %v467 = vmul.f32 %v451, 0.25
      %v468 = vmul.f32 %v456, 0.25
      %v469 = vmul.f32 %v459, 0.25
      %v470 = vld [vmem:[%s3] sm:$0xff]
      %v471 = vld [vmem:[%s3 + $0x8] sm:$0xff]
      %v472 = vld [vmem:[%s3 + $0x10] sm:$0xff]
      %v473 = vld [vmem:[%s3 + $0x18] sm:$0xff]
      %v474 = vld [vmem:[%s3 + $0x20] sm:$0xff]
      %v475 = vld [vmem:[%s3 + $0x28] sm:$0xff]
      %v476 = vld [vmem:[%s3 + $0x30] sm:$0xff]
      %v477 = vld [vmem:[%s3 + $0x38] sm:$0xff]
      %v478 = vadd.f32 %v462, %v470
      %v479 = vadd.f32 %v463, %v471
      %v480 = vadd.f32 %v464, %v472
      %v481 = vadd.f32 %v465, %v473
      %v482 = vadd.f32 %v466, %v474
      %v483 = vadd.f32 %v467, %v475
      %v484 = vadd.f32 %v468, %v476
      %v485 = vadd.f32 %v469, %v477
      %vm486 = vcmask 523264
      %v487 = vsel %vm486, %v478, -inf
      %488 = vmax.xlane.f32.xlu0 %v487
      %v489 = vpop.xlane.xlu0 %488
      %v490 = vsel %vm486, %v479, -inf
      %491 = vmax.xlane.f32.xlu0 %v490
      %v492 = vpop.xlane.xlu0 %491
      %v493 = vsel %vm486, %v480, -inf
      %494 = vmax.xlane.f32.xlu0 %v493
      %v495 = vpop.xlane.xlu0 %494
      %v496 = vsel %vm486, %v481, -inf
      %497 = vmax.xlane.f32.xlu0 %v496
      %v498 = vpop.xlane.xlu0 %497
      %v499 = vsel %vm486, %v482, -inf
      %500 = vmax.xlane.f32.xlu0 %v499
      %v501 = vpop.xlane.xlu0 %500
      %v502 = vsel %vm486, %v483, -inf
      %503 = vmax.xlane.f32.xlu0 %v502
      %v504 = vpop.xlane.xlu0 %503
      %v505 = vsel %vm486, %v484, -inf
      %506 = vmax.xlane.f32.xlu0 %v505
      %v507 = vpop.xlane.xlu0 %506
      %v508 = vsel %vm486, %v485, -inf
      %509 = vmax.xlane.f32.xlu0 %v508
      %v510 = vpop.xlane.xlu0 %509
      %v511 = vsub.f32 %v478, %v489
      %v512 = vsub.f32 %v479, %v492
      %v513 = vsub.f32 %v480, %v495
      %v514 = vsub.f32 %v481, %v498
      %v515 = vsub.f32 %v482, %v501
      %v516 = vsub.f32 %v483, %v504
      %v517 = vsub.f32 %v484, %v507
      %v518 = vsub.f32 %v485, %v510
      %v519 = vmul.f32 %v511, 1.442695
      %v520 = vpow.pop %v519
      %v521 = vmul.f32 %v512, 1.442695
      %v522 = vpow.pop %v521
      %v523 = vmul.f32 %v513, 1.442695
      %v524 = vpow.pop %v523
      %v525 = vmul.f32 %v514, 1.442695
      %v526 = vpow.pop %v525
      %v527 = vmul.f32 %v515, 1.442695
      %v528 = vpow.pop %v527
      %v529 = vmul.f32 %v516, 1.442695
      %v530 = vpow.pop %v529
      %v531 = vmul.f32 %v517, 1.442695
      %v532 = vpow.pop %v531
      %v533 = vmul.f32 %v518, 1.442695
      %v534 = vpow.pop %v533
      %v535 = vsel %vm486, %v520, 0.0
      %536 = vadd.xlane.f32.xlu0 %v535
      %v537 = vpop.xlane.xlu0 %536
      %v538 = vsel %vm486, %v522, 0.0
      %539 = vadd.xlane.f32.xlu0 %v538
      %v540 = vpop.xlane.xlu0 %539
      %v541 = vsel %vm486, %v524, 0.0
      %542 = vadd.xlane.f32.xlu0 %v541
      %v543 = vpop.xlane.xlu0 %542
      %v544 = vsel %vm486, %v526, 0.0
      %545 = vadd.xlane.f32.xlu0 %v544
      %v546 = vpop.xlane.xlu0 %545
      %v547 = vsel %vm486, %v528, 0.0
      %548 = vadd.xlane.f32.xlu0 %v547
      %v549 = vpop.xlane.xlu0 %548
      %v550 = vsel %vm486, %v530, 0.0
      %551 = vadd.xlane.f32.xlu0 %v550
      %v552 = vpop.xlane.xlu0 %551
      %v553 = vsel %vm486, %v532, 0.0
      %554 = vadd.xlane.f32.xlu0 %v553
      %v555 = vpop.xlane.xlu0 %554
      %v556 = vsel %vm486, %v534, 0.0
      %557 = vadd.xlane.f32.xlu0 %v556
      %v558 = vpop.xlane.xlu0 %557
      %v559 = vrcp.pop %v537
      %v560 = vrcp.pop %v540
      %v561 = vrcp.pop %v543
      %v562 = vrcp.pop %v546
      %v563 = vrcp.pop %v549
      %v564 = vrcp.pop %v552
      %v565 = vrcp.pop %v555
      %v566 = vrcp.pop %v558
      %v567 = vmul.f32 %v520, %v559
      %v568 = vmul.f32 %v522, %v560
      %v569 = vmul.f32 %v524, %v561
      %v570 = vmul.f32 %v526, %v562
      %v571 = vmul.f32 %v528, %v563
      %v572 = vmul.f32 %v530, %v564
      %v573 = vmul.f32 %v532, %v565
      %v574 = vmul.f32 %v534, %v566
      %v575 = vpack.c.bf16 %v568, %v567
      %v576 = vpack.c.bf16 %v570, %v569
      %v577 = vpack.c.bf16 %v572, %v571
      %v578 = vpack.c.bf16 %v574, %v573
      %579 = vrot.lane.b32.xlu0 %v356, 64
      %v580 = vpop.permute.xlu0 %579
      %581 = vrot.lane.b32.xlu0 %v357, 64
      %v582 = vpop.permute.xlu0 %581
      %583 = vrot.lane.b32.xlu0 %v358, 64
      %v584 = vpop.permute.xlu0 %583
      %585 = vrot.lane.b32.xlu0 %v359, 64
      %v586 = vpop.permute.xlu0 %585
      %v592 = vsel %vm486, %v575, 0
      %v595 = vsel %vm486, %v576, 0
      %v598 = vsel %vm486, %v577, 0
      %v601 = vsel %vm486, %v578, 0
      %603 = vmatprep.subr.bf16.mxu0 0
      %604 = vmatpush1.bf16.msra.mxu0 0
      %605 = vmatprep.subr.bf16.mxu0 0
      %606 = vmatpush1.bf16.msra.mxu0 0
      %607 = vmatprep.subr.bf16.mxu0 0
      %608 = vmatpush1.bf16.msra.mxu0 0
      %609 = vmatprep.subr.bf16.mxu0 0
      %610 = vmatpush1.bf16.msra.mxu0 0
      %611 = vmatprep.subr.bf16.mxu0 0
      %612 = vmatpush1.bf16.msra.mxu0 %v586
      %613 = vmatprep.subr.bf16.mxu0 0
      %614 = vmatpush1.bf16.msra.mxu0 %v584
      %615 = vmatprep.subr.bf16.mxu0 0
      %616 = vmatpush1.bf16.msra.mxu0 %v582
      %617 = vmatprep.subr.bf16.mxu0 0
      %618 = vmatpush1.bf16.msra.mxu0 %v580
      %619 = vmatprep.subr.bf16.mxu0 0
      %620 = vmatpush2.bf16.msra.mxu0 0
      %621 = vmatprep.subr.bf16.mxu0 0
      %622 = vmatpush2.bf16.msra.mxu0 0
      %623 = vmatprep.subr.bf16.mxu0 0
      %624 = vmatpush2.bf16.msra.mxu0 0
      %625 = vmatprep.subr.bf16.mxu0 0
      %626 = vmatpush2.bf16.msra.mxu0 0
      %627 = vmatprep.subr.bf16.mxu0 0
      %628 = vmatpush2.bf16.msra.mxu0 0
      %629 = vmatprep.subr.bf16.mxu0 0
      %630 = vmatpush2.bf16.msra.mxu0 0
      %631 = vmatprep.subr.bf16.mxu0 0
      %632 = vmatpush2.bf16.msra.mxu0 0
      %633 = vmatprep.subr.bf16.mxu0 0
      %634 = vmatpush2.bf16.msra.mxu0 0
      %635 = vmatprep.mubr.bf16.mxu0 0
      %636 = vmatmul.mubr.bf16.gmra.mxu0 %v592
      %v637 = vpop.f32.mrf.mxu0
      %v638 = vadd.f32 0.0, %v637
      %v639 = vpop.f32.mrf.mxu0
      %v640 = vpop.f32.mrf.mxu0
      %v641 = vadd.f32 0.0, %v640
      %v642 = vpop.f32.mrf.mxu0
      %643 = vmatprep.mubr.bf16.mxu0 0
      %644 = vmatmul.mubr.bf16.gmra.mxu0 %v595
      %v645 = vpop.f32.mrf.mxu0
      %v646 = vadd.f32 0.0, %v645
      %v647 = vpop.f32.mrf.mxu0
      %v648 = vpop.f32.mrf.mxu0
      %v649 = vadd.f32 0.0, %v648
      %v650 = vpop.f32.mrf.mxu0
      %651 = vmatprep.mubr.bf16.mxu0 0
      %652 = vmatmul.mubr.bf16.gmra.mxu0 %v598
      %v653 = vpop.f32.mrf.mxu0
      %v654 = vadd.f32 0.0, %v653
      %v655 = vpop.f32.mrf.mxu0
      %v656 = vpop.f32.mrf.mxu0
      %v657 = vadd.f32 0.0, %v656
      %v658 = vpop.f32.mrf.mxu0
      %659 = vmatprep.mubr.bf16.mxu0 0
      %660 = vmatmul.mubr.bf16.gmra.mxu0 %v601
      %v661 = vpop.f32.mrf.mxu0
      %v662 = vadd.f32 0.0, %v661
      %v663 = vpop.f32.mrf.mxu0
      %v664 = vpop.f32.mrf.mxu0
      %v665 = vadd.f32 0.0, %v664
      %v666 = vpop.f32.mrf.mxu0
      %667 = vdwg.mxu0
      %668 = vrot.lane.b32.xlu0 %v356, 112
      %v669 = vpop.permute.xlu0 %668
      %670 = vrot.lane.b32.xlu0 %v357, 112
      %v671 = vpop.permute.xlu0 %670
      %672 = vrot.lane.b32.xlu0 %v358, 112
      %v673 = vpop.permute.xlu0 %672
      %674 = vrot.lane.b32.xlu0 %v359, 112
      %v675 = vpop.permute.xlu0 %674
      %676 = vrot.lane.b32.xlu0 %v356, 80
      %v677 = vpop.permute.xlu0 %676
      %678 = vrot.lane.b32.xlu0 %v357, 80
      %v679 = vpop.permute.xlu0 %678
      %680 = vrot.lane.b32.xlu0 %v358, 80
      %v681 = vpop.permute.xlu0 %680
      %682 = vrot.lane.b32.xlu0 %v359, 80
      %v683 = vpop.permute.xlu0 %682
      %v685 = vsel %vm372, %v669, 0
      %v688 = vsel %vm372, %v671, 0
      %v691 = vsel %vm372, %v673, 0
      %v694 = vsel %vm372, %v675, 0
      %v697 = vsel %vm372, %v677, 0
      %v700 = vsel %vm372, %v679, 0
      %v703 = vsel %vm372, %v681, 0
      %v706 = vsel %vm372, %v683, 0
      %708 = vmatprep.subr.bf16.mxu0 0
      %709 = vmatpush1.bf16.xpose.msra.mxu0 0
      %710 = vmatprep.subr.bf16.mxu0 0
      %711 = vmatpush1.bf16.xpose.msra.mxu0 0
      %712 = vmatprep.subr.bf16.mxu0 0
      %713 = vmatpush1.bf16.xpose.msra.mxu0 0
      %714 = vmatprep.subr.bf16.mxu0 0
      %715 = vmatpush1.bf16.xpose.msra.mxu0 0
      %716 = vmatprep.subr.bf16.mxu0 0
      %717 = vmatpush1.bf16.xpose.msra.mxu0 %v706
      %718 = vmatprep.subr.bf16.mxu0 0
      %719 = vmatpush1.bf16.xpose.msra.mxu0 %v703
      %720 = vmatprep.subr.bf16.mxu0 0
      %721 = vmatpush1.bf16.xpose.msra.mxu0 %v700
      %722 = vmatprep.subr.bf16.mxu0 0
      %723 = vmatpush1.bf16.xpose.msra.mxu0 %v697
      %724 = vmatprep.subr.bf16.mxu0 0
      %725 = vmatpush2.bf16.xpose.msra.mxu0 0
      %726 = vmatprep.subr.bf16.mxu0 0
      %727 = vmatpush2.bf16.xpose.msra.mxu0 0
      %728 = vmatprep.subr.bf16.mxu0 0
      %729 = vmatpush2.bf16.xpose.msra.mxu0 0
      %730 = vmatprep.subr.bf16.mxu0 0
      %731 = vmatpush2.bf16.xpose.msra.mxu0 0
      %732 = vmatprep.subr.bf16.mxu0 0
      %733 = vmatpush2.bf16.xpose.msra.mxu0 0
      %734 = vmatprep.subr.bf16.mxu0 0
      %735 = vmatpush2.bf16.xpose.msra.mxu0 0
      %736 = vmatprep.subr.bf16.mxu0 0
      %737 = vmatpush2.bf16.xpose.msra.mxu0 0
      %738 = vmatprep.subr.bf16.mxu0 0
      %739 = vmatpush2.bf16.xpose.msra.mxu0 0
      %740 = vmatprep.mubr.bf16.mxu0 0
      %741 = vmatmul.mubr.bf16.gmra.mxu0 %v685
      %v742 = vpop.f32.mrf.mxu0
      %v743 = vadd.f32 0.0, %v742
      %v744 = vpop.f32.mrf.mxu0
      %v745 = vpop.f32.mrf.mxu0
      %v746 = vadd.f32 0.0, %v745
      %v747 = vpop.f32.mrf.mxu0
      %748 = vmatprep.mubr.bf16.mxu0 0
      %749 = vmatmul.mubr.bf16.gmra.mxu0 %v688
      %v750 = vpop.f32.mrf.mxu0
      %v751 = vadd.f32 0.0, %v750
      %v752 = vpop.f32.mrf.mxu0
      %v753 = vpop.f32.mrf.mxu0
      %v754 = vadd.f32 0.0, %v753
      %v755 = vpop.f32.mrf.mxu0
      %756 = vmatprep.mubr.bf16.mxu0 0
      %757 = vmatmul.mubr.bf16.gmra.mxu0 %v691
      %v758 = vpop.f32.mrf.mxu0
      %v759 = vadd.f32 0.0, %v758
      %v760 = vpop.f32.mrf.mxu0
      %v761 = vpop.f32.mrf.mxu0
      %v762 = vadd.f32 0.0, %v761
      %v763 = vpop.f32.mrf.mxu0
      %764 = vmatprep.mubr.bf16.mxu0 0
      %765 = vmatmul.mubr.bf16.gmra.mxu0 %v694
      %v766 = vpop.f32.mrf.mxu0
      %v767 = vadd.f32 0.0, %v766
      %v768 = vpop.f32.mrf.mxu0
      %v769 = vpop.f32.mrf.mxu0
      %v770 = vadd.f32 0.0, %v769
      %v771 = vpop.f32.mrf.mxu0
      %772 = vdwg.mxu0
      %v773 = vmul.f32 %v743, 0.25
      %v774 = vmul.f32 %v746, 0.25
      %v775 = vmul.f32 %v751, 0.25
      %v776 = vmul.f32 %v754, 0.25
      %v777 = vmul.f32 %v759, 0.25
      %v778 = vmul.f32 %v762, 0.25
      %v779 = vmul.f32 %v767, 0.25
      %v780 = vmul.f32 %v770, 0.25
      %s781 = scalar_lea.vmem %s3, 64
      %v782 = vld [vmem:[%s781] sm:$0xff]
      %v783 = vld [vmem:[%s781 + $0x8] sm:$0xff]
      %v784 = vld [vmem:[%s781 + $0x10] sm:$0xff]
      %v785 = vld [vmem:[%s781 + $0x18] sm:$0xff]
      %v786 = vld [vmem:[%s781 + $0x20] sm:$0xff]
      %v787 = vld [vmem:[%s781 + $0x28] sm:$0xff]
      %v788 = vld [vmem:[%s781 + $0x30] sm:$0xff]
      %v789 = vld [vmem:[%s781 + $0x38] sm:$0xff]
      %v790 = vadd.f32 %v773, %v782
      %v791 = vadd.f32 %v774, %v783
      %v792 = vadd.f32 %v775, %v784
      %v793 = vadd.f32 %v776, %v785
      %v794 = vadd.f32 %v777, %v786
      %v795 = vadd.f32 %v778, %v787
      %v796 = vadd.f32 %v779, %v788
      %v797 = vadd.f32 %v780, %v789
      %v798 = vsel %vm486, %v790, -inf
      %799 = vmax.xlane.f32.xlu0 %v798
      %v800 = vpop.xlane.xlu0 %799
      %v801 = vsel %vm486, %v791, -inf
      %802 = vmax.xlane.f32.xlu0 %v801
      %v803 = vpop.xlane.xlu0 %802
      %v804 = vsel %vm486, %v792, -inf
      %805 = vmax.xlane.f32.xlu0 %v804
      %v806 = vpop.xlane.xlu0 %805
      %v807 = vsel %vm486, %v793, -inf
      %808 = vmax.xlane.f32.xlu0 %v807
      %v809 = vpop.xlane.xlu0 %808
      %v810 = vsel %vm486, %v794, -inf
      %811 = vmax.xlane.f32.xlu0 %v810
      %v812 = vpop.xlane.xlu0 %811
      %v813 = vsel %vm486, %v795, -inf
      %814 = vmax.xlane.f32.xlu0 %v813
      %v815 = vpop.xlane.xlu0 %814
      %v816 = vsel %vm486, %v796, -inf
      %817 = vmax.xlane.f32.xlu0 %v816
      %v818 = vpop.xlane.xlu0 %817
      %v819 = vsel %vm486, %v797, -inf
      %820 = vmax.xlane.f32.xlu0 %v819
      %v821 = vpop.xlane.xlu0 %820
      %v822 = vsub.f32 %v790, %v800
      %v823 = vsub.f32 %v791, %v803
      %v824 = vsub.f32 %v792, %v806
      %v825 = vsub.f32 %v793, %v809
      %v826 = vsub.f32 %v794, %v812
      %v827 = vsub.f32 %v795, %v815
      %v828 = vsub.f32 %v796, %v818
      %v829 = vsub.f32 %v797, %v821
      %v830 = vmul.f32 %v822, 1.442695
      %v831 = vpow.pop %v830
      %v832 = vmul.f32 %v823, 1.442695
      %v833 = vpow.pop %v832
      %v834 = vmul.f32 %v824, 1.442695
      %v835 = vpow.pop %v834
      %v836 = vmul.f32 %v825, 1.442695
      %v837 = vpow.pop %v836
      %v838 = vmul.f32 %v826, 1.442695
      %v839 = vpow.pop %v838
      %v840 = vmul.f32 %v827, 1.442695
      %v841 = vpow.pop %v840
      %v842 = vmul.f32 %v828, 1.442695
      %v843 = vpow.pop %v842
      %v844 = vmul.f32 %v829, 1.442695
      %v845 = vpow.pop %v844
      %v846 = vsel %vm486, %v831, 0.0
      %847 = vadd.xlane.f32.xlu0 %v846
      %v848 = vpop.xlane.xlu0 %847
      %v849 = vsel %vm486, %v833, 0.0
      %850 = vadd.xlane.f32.xlu0 %v849
      %v851 = vpop.xlane.xlu0 %850
      %v852 = vsel %vm486, %v835, 0.0
      %853 = vadd.xlane.f32.xlu0 %v852
      %v854 = vpop.xlane.xlu0 %853
      %v855 = vsel %vm486, %v837, 0.0
      %856 = vadd.xlane.f32.xlu0 %v855
      %v857 = vpop.xlane.xlu0 %856
      %v858 = vsel %vm486, %v839, 0.0
      %859 = vadd.xlane.f32.xlu0 %v858
      %v860 = vpop.xlane.xlu0 %859
      %v861 = vsel %vm486, %v841, 0.0
      %862 = vadd.xlane.f32.xlu0 %v861
      %v863 = vpop.xlane.xlu0 %862
      %v864 = vsel %vm486, %v843, 0.0
      %865 = vadd.xlane.f32.xlu0 %v864
      %v866 = vpop.xlane.xlu0 %865
      %v867 = vsel %vm486, %v845, 0.0
      %868 = vadd.xlane.f32.xlu0 %v867
      %v869 = vpop.xlane.xlu0 %868
      %v870 = vrcp.pop %v848
      %v871 = vrcp.pop %v851
      %v872 = vrcp.pop %v854
      %v873 = vrcp.pop %v857
      %v874 = vrcp.pop %v860
      %v875 = vrcp.pop %v863
      %v876 = vrcp.pop %v866
      %v877 = vrcp.pop %v869
      %v878 = vmul.f32 %v831, %v870
      %v879 = vmul.f32 %v833, %v871
      %v880 = vmul.f32 %v835, %v872
      %v881 = vmul.f32 %v837, %v873
      %v882 = vmul.f32 %v839, %v874
      %v883 = vmul.f32 %v841, %v875
      %v884 = vmul.f32 %v843, %v876
      %v885 = vmul.f32 %v845, %v877
      %v886 = vpack.c.bf16 %v879, %v878
      %v887 = vpack.c.bf16 %v881, %v880
      %v888 = vpack.c.bf16 %v883, %v882
      %v889 = vpack.c.bf16 %v885, %v884
      %890 = vrot.lane.b32.xlu0 %v356, 48
      %v891 = vpop.permute.xlu0 %890
      %892 = vrot.lane.b32.xlu0 %v357, 48
      %v893 = vpop.permute.xlu0 %892
      %894 = vrot.lane.b32.xlu0 %v358, 48
      %v895 = vpop.permute.xlu0 %894
      %896 = vrot.lane.b32.xlu0 %v359, 48
      %v897 = vpop.permute.xlu0 %896
      %v903 = vsel %vm486, %v886, 0
      %v906 = vsel %vm486, %v887, 0
      %v909 = vsel %vm486, %v888, 0
      %v912 = vsel %vm486, %v889, 0
      %914 = vmatprep.subr.bf16.mxu0 0
      %915 = vmatpush1.bf16.msra.mxu0 0
      %916 = vmatprep.subr.bf16.mxu0 0
      %917 = vmatpush1.bf16.msra.mxu0 0
      %918 = vmatprep.subr.bf16.mxu0 0
      %919 = vmatpush1.bf16.msra.mxu0 0
      %920 = vmatprep.subr.bf16.mxu0 0
      %921 = vmatpush1.bf16.msra.mxu0 0
      %922 = vmatprep.subr.bf16.mxu0 0
      %923 = vmatpush1.bf16.msra.mxu0 %v897
      %924 = vmatprep.subr.bf16.mxu0 0
      %925 = vmatpush1.bf16.msra.mxu0 %v895
      %926 = vmatprep.subr.bf16.mxu0 0
      %927 = vmatpush1.bf16.msra.mxu0 %v893
      %928 = vmatprep.subr.bf16.mxu0 0
      %929 = vmatpush1.bf16.msra.mxu0 %v891
      %930 = vmatprep.subr.bf16.mxu0 0
      %931 = vmatpush2.bf16.msra.mxu0 0
      %932 = vmatprep.subr.bf16.mxu0 0
      %933 = vmatpush2.bf16.msra.mxu0 0
      %934 = vmatprep.subr.bf16.mxu0 0
      %935 = vmatpush2.bf16.msra.mxu0 0
      %936 = vmatprep.subr.bf16.mxu0 0
      %937 = vmatpush2.bf16.msra.mxu0 0
      %938 = vmatprep.subr.bf16.mxu0 0
      %939 = vmatpush2.bf16.msra.mxu0 0
      %940 = vmatprep.subr.bf16.mxu0 0
      %941 = vmatpush2.bf16.msra.mxu0 0
      %942 = vmatprep.subr.bf16.mxu0 0
      %943 = vmatpush2.bf16.msra.mxu0 0
      %944 = vmatprep.subr.bf16.mxu0 0
      %945 = vmatpush2.bf16.msra.mxu0 0
      %946 = vmatprep.mubr.bf16.mxu0 0
      %947 = vmatmul.mubr.bf16.gmra.mxu0 %v903
      %v948 = vpop.f32.mrf.mxu0
      %v949 = vadd.f32 0.0, %v948
      %v950 = vpop.f32.mrf.mxu0
      %v951 = vpop.f32.mrf.mxu0
      %v952 = vadd.f32 0.0, %v951
      %v953 = vpop.f32.mrf.mxu0
      %954 = vmatprep.mubr.bf16.mxu0 0
      %955 = vmatmul.mubr.bf16.gmra.mxu0 %v906
      %v956 = vpop.f32.mrf.mxu0
      %v957 = vadd.f32 0.0, %v956
      %v958 = vpop.f32.mrf.mxu0
      %v959 = vpop.f32.mrf.mxu0
      %v960 = vadd.f32 0.0, %v959
      %v961 = vpop.f32.mrf.mxu0
      %962 = vmatprep.mubr.bf16.mxu0 0
      %963 = vmatmul.mubr.bf16.gmra.mxu0 %v909
      %v964 = vpop.f32.mrf.mxu0
      %v965 = vadd.f32 0.0, %v964
      %v966 = vpop.f32.mrf.mxu0
      %v967 = vpop.f32.mrf.mxu0
      %v968 = vadd.f32 0.0, %v967
      %v969 = vpop.f32.mrf.mxu0
      %970 = vmatprep.mubr.bf16.mxu0 0
      %971 = vmatmul.mubr.bf16.gmra.mxu0 %v912
      %v972 = vpop.f32.mrf.mxu0
      %v973 = vadd.f32 0.0, %v972
      %v974 = vpop.f32.mrf.mxu0
      %v975 = vpop.f32.mrf.mxu0
      %v976 = vadd.f32 0.0, %v975
      %v977 = vpop.f32.mrf.mxu0
      %978 = vdwg.mxu0
      %987 = vrot.lane.b32.xlu0 %v949, 16
      %v988 = vpop.permute.xlu0 %987
      %989 = vrot.lane.b32.xlu0 %v952, 16
      %v990 = vpop.permute.xlu0 %989
      %991 = vrot.lane.b32.xlu0 %v957, 16
      %v992 = vpop.permute.xlu0 %991
      %993 = vrot.lane.b32.xlu0 %v960, 16
      %v994 = vpop.permute.xlu0 %993
      %995 = vrot.lane.b32.xlu0 %v965, 16
      %v996 = vpop.permute.xlu0 %995
      %997 = vrot.lane.b32.xlu0 %v968, 16
      %v998 = vpop.permute.xlu0 %997
      %999 = vrot.lane.b32.xlu0 %v973, 16
      %v1000 = vpop.permute.xlu0 %999
      %1001 = vrot.lane.b32.xlu0 %v976, 16
      %v1002 = vpop.permute.xlu0 %1001
      %v1011 = vsel %vm372, %v638, %v988
      %v1012 = vsel %vm372, %v641, %v990
      %v1013 = vsel %vm372, %v646, %v992
      %v1014 = vsel %vm372, %v649, %v994
      %v1015 = vsel %vm372, %v654, %v996
      %v1016 = vsel %vm372, %v657, %v998
      %v1017 = vsel %vm372, %v662, %v1000
      %v1018 = vsel %vm372, %v665, %v1002
      %v1019 = vpack.c.bf16 %v1012, %v1011
      %v1020 = vpack.c.bf16 %v1014, %v1013
      %v1021 = vpack.c.bf16 %v1016, %v1015
      %v1022 = vpack.c.bf16 %v1018, %v1017
      %v1023 = vld [vmem:[%s4] sm:$0xff]
      %v1024 = vld [vmem:[%s4 + $0x8] sm:$0xff]
      %v1025 = vld [vmem:[%s4 + $0x10] sm:$0xff]
      %v1026 = vld [vmem:[%s4 + $0x18] sm:$0xff]
      %v1027 = vpack.c.bf16 %v1024, %v1023
      %v1028 = vpack.c.bf16 %v1026, %v1025
      %v1029 = vld [vmem:[%s5] sm:$0x1]
      %v1031 = vlaneseq
      %v1032 = vshrl.u32 %v1031, 7
      %v1033 = vsub.s32 0, %v1032
      %v1034 = vrot.slane %v1029, %v1033
      %v1037 = vsel %vm278, %v1019, 0
      %v1040 = vsel %vm278, %v1020, 0
      %v1043 = vsel %vm278, %v1021, 0
      %v1046 = vsel %vm278, %v1022, 0
      %1048 = vmatprep.subr.bf16.mxu0 0
      %1049 = vmatpush1.bf16.msra.mxu0 0
      %1050 = vmatprep.subr.bf16.mxu0 0
      %1051 = vmatpush1.bf16.msra.mxu0 0
      %1052 = vmatprep.subr.bf16.mxu0 0
      %1053 = vmatpush1.bf16.msra.mxu0 0
      %1054 = vmatprep.subr.bf16.mxu0 0
      %1055 = vmatpush1.bf16.msra.mxu0 0
      %1056 = vmatprep.subr.bf16.mxu0 0
      %1057 = vmatpush1.bf16.msra.mxu0 0
      %1058 = vmatprep.subr.bf16.mxu0 0
      %1059 = vmatpush1.bf16.msra.mxu0 0
      %1060 = vmatprep.subr.bf16.mxu0 0
      %1061 = vmatpush1.bf16.msra.mxu0 %v1028
      %1062 = vmatprep.subr.bf16.mxu0 0
      %1063 = vmatpush1.bf16.msra.mxu0 %v1027
      %1064 = vmatprep.subr.bf16.mxu0 0
      %1065 = vmatpush2.bf16.msra.mxu0 0
      %1066 = vmatprep.subr.bf16.mxu0 0
      %1067 = vmatpush2.bf16.msra.mxu0 0
      %1068 = vmatprep.subr.bf16.mxu0 0
      %1069 = vmatpush2.bf16.msra.mxu0 0
      %1070 = vmatprep.subr.bf16.mxu0 0
      %1071 = vmatpush2.bf16.msra.mxu0 0
      %1072 = vmatprep.subr.bf16.mxu0 0
      %1073 = vmatpush2.bf16.msra.mxu0 0
      %1074 = vmatprep.subr.bf16.mxu0 0
      %1075 = vmatpush2.bf16.msra.mxu0 0
      %1076 = vmatprep.subr.bf16.mxu0 0
      %1077 = vmatpush2.bf16.msra.mxu0 0
      %1078 = vmatprep.subr.bf16.mxu0 0
      %1079 = vmatpush2.bf16.msra.mxu0 0
      %1080 = vmatprep.mubr.bf16.mxu0 0
      %1081 = vmatmul.mubr.bf16.gmra.mxu0 %v1037
      %v1082 = vpop.f32.mrf.mxu0
      %v1083 = vadd.f32 %v1034, %v1082
      %v1084 = vpop.f32.mrf.mxu0
      %v1085 = vpop.f32.mrf.mxu0
      %v1086 = vadd.f32 %v1034, %v1085
      %v1087 = vpop.f32.mrf.mxu0
      %1088 = vmatprep.mubr.bf16.mxu0 0
      %1089 = vmatmul.mubr.bf16.gmra.mxu0 %v1040
      %v1090 = vpop.f32.mrf.mxu0
      %v1091 = vadd.f32 %v1034, %v1090
      %v1092 = vpop.f32.mrf.mxu0
      %v1093 = vpop.f32.mrf.mxu0
      %v1094 = vadd.f32 %v1034, %v1093
      %v1095 = vpop.f32.mrf.mxu0
      %1096 = vmatprep.mubr.bf16.mxu0 0
      %1097 = vmatmul.mubr.bf16.gmra.mxu0 %v1043
      %v1098 = vpop.f32.mrf.mxu0
      %v1099 = vadd.f32 %v1034, %v1098
      %v1100 = vpop.f32.mrf.mxu0
      %v1101 = vpop.f32.mrf.mxu0
      %v1102 = vadd.f32 %v1034, %v1101
      %v1103 = vpop.f32.mrf.mxu0
      %1104 = vmatprep.mubr.bf16.mxu0 0
      %1105 = vmatmul.mubr.bf16.gmra.mxu0 %v1046
      %v1106 = vpop.f32.mrf.mxu0
      %v1107 = vadd.f32 %v1034, %v1106
      %v1108 = vpop.f32.mrf.mxu0
      %v1109 = vpop.f32.mrf.mxu0
      %v1110 = vadd.f32 %v1034, %v1109
      %v1111 = vpop.f32.mrf.mxu0
      %1112 = vdwg.mxu0
      %1113 = vst.msk [vmem:[%s251] sm:$0xff] %vm278, %v1083
      %1114 = vst.msk [vmem:[%s251 + $0x8] sm:$0xff] %vm278, %v1086
      %1115 = vst.msk [vmem:[%s251 + $0x10] sm:$0xff] %vm278, %v1091
      %1116 = vst.msk [vmem:[%s251 + $0x18] sm:$0xff] %vm278, %v1094
      %1117 = vst.msk [vmem:[%s251 + $0x20] sm:$0xff] %vm278, %v1099
      %1118 = vst.msk [vmem:[%s251 + $0x28] sm:$0xff] %vm278, %v1102
      %1119 = vst.msk [vmem:[%s251 + $0x30] sm:$0xff] %vm278, %v1107
      %1120 = vst.msk [vmem:[%s251 + $0x38] sm:$0xff] %vm278, %v1110
      %p1121 = scmp.lt.s32.totalorder %s17, 3
      %s1122 = scalar_select %p1121, %s17, 3
      %s1123 = smul.addr %s1122, 8
      %s1124 = smul.addr %s1123, 8
      %s1125 = scalar_lea.vmem %s6, %s1124
      // Predicated region
      $region45: #{window_attention_fwd.1} parent=43 // pred_check
        %p1126 = pneg %p166
      $region46: #{window_attention_fwd.1} parent=43 // pred_check_branch
        %1128 = sbr.rel (%p1126) target = $region48
      $region47: #{window_attention_fwd.1} parent=43 // pred_region
        _
      $region48: #{window_attention_fwd.1} parent=43 // pred_fallthru
        _
    $region44: #{window_attention_fwd.1} parent=5 // pred_fallthru
      _
    %p1129 = scmp.le.s32.totalorder 2, %s12
    // Predicated region
    $region49: #{window_attention_fwd.1} parent=5 // pred_check
      %p1130 = pneg %p1129
    $region50: #{window_attention_fwd.1} parent=5 // pred_check_branch
      %1132 = sbr.rel (%p1130) target = $region52
    $region51: #{window_attention_fwd.1} parent=5 // pred_region
      %s1133 = ssub.s32 %s12, 2
      // Predicated region
      $region53: #{window_attention_fwd.1} parent=51 // pred_check
        %p1134 = pneg %p172
      $region54: #{window_attention_fwd.1} parent=51 // pred_check_branch
        %1136 = sbr.rel (%p1134) target = $region56
      $region55: #{window_attention_fwd.1} parent=51 // pred_region
        %p1137 = scmp.lt.s32.totalorder %s18, 3
        %s1138 = scalar_select %p1137, %s18, 3
        %s1139 = smul.addr %s1138, 8
        %s1140 = smul.addr %s1139, 8
        %s1141 = scalar_lea.vmem %s6, %s1140
      $region56: #{window_attention_fwd.1} parent=51 // pred_fallthru
        _
    $region52: #{window_attention_fwd.1} parent=5 // pred_fallthru
      _
  $region6: #{window_attention_fwd.1} parent=0 // loop_footer
    %s16 = sadd.s32 1, %s12
  $region7: #{window_attention_fwd.1} parent=0 // loop_footer_branch
    %11 = sbr.rel target = $region3
  $region8: #{window_attention_fwd.1} parent=0 // loop_exit
    _

</llo_original>
